<compile_context>
chip_gen: v5e
topology: v5e:2x2
jax: 0.10.0
libtpu: 0.0.40
codegen_flags: <defaults>
</compile_context>

<pallas_src>
import functools

import jax
import jax.numpy as jnp
from jax import lax
from jax.experimental import pallas as pl
from jax.experimental.pallas import tpu as pltpu


# ---------------------------------------------------------------------------
# Helpers
# ---------------------------------------------------------------------------

def _round_up(x, m):
    return (x + m - 1) // m * m


def _cdiv(a, b):
    return -(-a // b)


def _neg_pad(dtype):
    # Finite, very negative pad for vocab-padding columns (ignored by softmax);
    # dtype-aware so fp16/bf16 tables don't overflow to inf.
    return float(jnp.finfo(dtype).min) / 2


def _vmem_capacity_bytes():
    try:
        return int(pltpu.get_tpu_info().vmem_capacity_bytes)
    except Exception:
        return 64 * 1024 * 1024  # conservative fallback (v7x per-core VMEM)


# ---------------------------------------------------------------------------
# Shared CE accumulation step (loss_ref is a grid-resident (1,1) accumulator)
# ---------------------------------------------------------------------------

def _ce_step(loss_ref, logits, tgt_col, row_start, step, num_steps, *, n_valid, inv_n):
    @pl.when(step == 0)
    def _init():
        loss_ref[...] = jnp.zeros_like(loss_ref)

    cols = lax.broadcasted_iota(jnp.int32, logits.shape, 1)          # (tr, Vp)
    m = jnp.max(logits, axis=-1, keepdims=True)                      # (tr, 1)
    lse = m + jnp.log(jnp.sum(jnp.exp(logits - m), axis=-1, keepdims=True))
    # Target logit via select (no second one-hot / matmul).
    tgt_logit = jnp.sum(jnp.where(tgt_col == cols, logits, 0.0),
                        axis=-1, keepdims=True)                      # (tr, 1)
    # Mask padded tail rows out of the mean.
    rows = row_start + lax.broadcasted_iota(jnp.int32, (logits.shape[0], 1), 0)
    per_row = jnp.where(rows < n_valid, lse - tgt_logit, 0.0)        # (tr, 1)
    loss_ref[...] += jnp.sum(per_row, axis=0, keepdims=True)         # (1, 1)

    @pl.when(step == num_steps - 1)
    def _finalize():
        loss_ref[...] = loss_ref[...] * inv_n


# ---------------------------------------------------------------------------
# Fast path: VMEM-resident table, gather == one-hot MXU matmul
# ---------------------------------------------------------------------------

def _onehot_logits_f32(idx_col, table_block):
    tr = idx_col.shape[0]
    vr = table_block.shape[0]
    cols = lax.broadcasted_iota(jnp.int32, (tr, vr), 1)
    onehot = (idx_col == cols).astype(table_block.dtype)
    return jnp.dot(onehot, table_block, preferred_element_type=jnp.float32)


def _resident_logits_kernel(idx_ref, table_ref, logits_ref):
    logits_ref[...] = _onehot_logits_f32(idx_ref[...], table_ref[...]).astype(logits_ref.dtype)


def _resident_ce_kernel(idx_ref, tgt_ref, table_ref, logits_ref, loss_ref,
                        *, tr, n_valid, inv_n, tiles_per_core):
    c = pl.program_id(0)
    i = pl.program_id(1)
    logits = _onehot_logits_f32(idx_ref[...], table_ref[...])
    logits_ref[...] = logits.astype(logits_ref.dtype)
    row_start = (c * tiles_per_core + i) * tr
    _ce_step(loss_ref, logits, tgt_ref[...], row_start, i, pl.num_programs(1),
             n_valid=n_valid, inv_n=inv_n)


def _resident_ce_loss_only_kernel(idx_ref, tgt_ref, table_ref, loss_ref,
                                  *, tr, n_valid, inv_n, tiles_per_core):
    c = pl.program_id(0)
    i = pl.program_id(1)
    logits = _onehot_logits_f32(idx_ref[...], table_ref[...])
    row_start = (c * tiles_per_core + i) * tr
    _ce_step(loss_ref, logits, tgt_ref[...], row_start, i, pl.num_programs(1),
             n_valid=n_valid, inv_n=inv_n)


# ---------------------------------------------------------------------------
# Fallback path: HBM-resident table, double-buffered row-gather pipeline
# ---------------------------------------------------------------------------

def _issue_row_gather(idx_ref, table_hbm, buf_ref, sem_ref, slot, base, tr):
    for r in range(tr):
        row = idx_ref[base + r]
        pltpu.make_async_copy(
            table_hbm.at[pl.ds(row, 1), :],
            buf_ref.at[slot, pl.ds(r, 1), :],
            sem_ref.at[slot, r],
        ).start()


def _wait_row_gather(table_hbm, buf_ref, sem_ref, slot, tr):
    # NOTE: the started copy objects cannot cross grid iterations, so the waits
    # rebuild descriptors with a shape-matching source (row 0); the semaphore
    # byte counts are identical to the started copies, so the wait is exact.
    for r in range(tr):
        pltpu.make_async_copy(
            table_hbm.at[pl.ds(0, 1), :],
            buf_ref.at[slot, pl.ds(r, 1), :],
            sem_ref.at[slot, r],
        ).wait()


def _pipelined_gather(idx_ref, table_hbm, buf_ref, sem_ref, tr):
    """Double-buffered gather across grid tiles.

    At tile i: (prime tile 0 if i==0), issue tile i+1's row DMAs into the other
    slot, then wait for tile i's slot and return it.  Requires the grid axis to
    be "arbitrary" (sequential) so priming/ping-pong stay valid.
    """
    i = pl.program_id(0)
    nt = pl.num_programs(0)

    @pl.when(i == 0)
    def _prime():
        _issue_row_gather(idx_ref, table_hbm, buf_ref, sem_ref, 0, 0, tr)

    @pl.when(i + 1 < nt)
    def _prefetch_next():
        _issue_row_gather(idx_ref, table_hbm, buf_ref, sem_ref,
                          (i + 1) % 2, (i + 1) * tr, tr)

    slot = i % 2
    _wait_row_gather(table_hbm, buf_ref, sem_ref, slot, tr)
    return slot


def _gather_logits_kernel(idx_ref, table_hbm, logits_ref, buf_ref, sem_ref, *, tr):
    slot = _pipelined_gather(idx_ref, table_hbm, buf_ref, sem_ref, tr)
    logits_ref[...] = buf_ref[slot].astype(logits_ref.dtype)


def _gather_ce_kernel(idx_ref, tgt_ref, table_hbm, logits_ref, loss_ref,
                      buf_ref, sem_ref, *, tr, n_valid, inv_n):
    slot = _pipelined_gather(idx_ref, table_hbm, buf_ref, sem_ref, tr)
    rows = buf_ref[slot].astype(jnp.float32)
    logits_ref[...] = rows.astype(logits_ref.dtype)
    i = pl.program_id(0)
    _ce_step(loss_ref, rows, tgt_ref[...], i * tr, i, pl.num_programs(0),
             n_valid=n_valid, inv_n=inv_n)


def _gather_ce_loss_only_kernel(idx_ref, tgt_ref, table_hbm, loss_ref,
                                buf_ref, sem_ref, *, tr, n_valid, inv_n):
    slot = _pipelined_gather(idx_ref, table_hbm, buf_ref, sem_ref, tr)
    rows = buf_ref[slot].astype(jnp.float32)
    i = pl.program_id(0)
    _ce_step(loss_ref, rows, tgt_ref[...], i * tr, i, pl.num_programs(0),
             n_valid=n_valid, inv_n=inv_n)


# ---------------------------------------------------------------------------
# Wrapper (mirrors BigramModel.forward)
# ---------------------------------------------------------------------------

def bigram_forward(idx, table, targets=None, *, row_tile=None, loss_only=False,
                   logits_dtype=None, force_gather=False):
    """Mirrors BigramModel.forward.

    idx:     (B, T) int32 token ids in [0, V)
    table:   (V, V) float embedding table
    targets: optional (B, T) int32

    Returns (logits, loss):
      - targets is None:          logits (B, T, V), loss None
      - targets given:            logits (B*T, V), loss scalar f32
      - targets given, loss_only: (None, loss)  -- skips logits HBM writeback
    """
    B, T = idx.shape
    V = table.shape[0]
    N = B * T
    itemsize = jnp.dtype(table.dtype).itemsize
    Vp = _round_up(V, 128)                       # lane-dense vocab dim

    # Per-generation VMEM budgets (v7x: 64 MiB, v5e/v6e: 128 MiB).
    cap = _vmem_capacity_bytes()
    vmem_limit = int(max(min(cap // 2, 64 * 1024 * 1024), 16 * 1024 * 1024))
    table_budget = cap // 16                     # resident table (double-buffered)
    block_budget = cap // 16                     # per gather buffer / logits tile

    logits_dt = table.dtype if logits_dtype is None else logits_dtype
    pad_val = _neg_pad(table.dtype)
    use_resident = (not force_gather) and (Vp * Vp * itemsize <= table_budget)

    # Row tile: largest multiple of 8 keeping one (tr, Vp) tile within budget.
    tr_cap = 1024 if use_resident else 256       # unrolled-DMA cap on gather path
    tr_auto = max(8, min(tr_cap, (block_budget // (Vp * itemsize)) // 8 * 8))
    tr = tr_auto if row_tile is None else max(8, _round_up(int(row_tile), 8))
    tr = min(tr, max(8, _round_up(N, 8)))

    idx_flat = idx.reshape(-1).astype(jnp.int32)
    inv_n = 1.0 / float(N)

    def params(sem):
        return pltpu.CompilerParams(dimension_semantics=sem,
                                    vmem_limit_bytes=vmem_limit)

    def unpad(x):
        # Skip the (copy-inducing) slice when shapes are already aligned.
        return x if (x.shape[0] == N and x.shape[1] == V) else x[:N, :V]

    # ------------------------------------------------------------------ fast
    if use_resident:
        table_res = table
        if Vp != V:
            # Extra columns -> huge-negative (ignored by softmax); extra rows are
            # never selected since token ids < V.
            table_res = jnp.pad(table_res, ((0, 0), (0, Vp - V)), constant_values=pad_val)
            table_res = jnp.pad(table_res, ((0, Vp - V), (0, 0)))

        if targets is None:
            n_tiles = _cdiv(N, tr)
            N_pad = n_tiles * tr
            idx2 = (idx_flat if N_pad == N else jnp.pad(idx_flat, (0, N_pad - N))).reshape(N_pad, 1)
            logits = pl.pallas_call(
                _resident_logits_kernel,
                out_shape=jax.ShapeDtypeStruct((N_pad, Vp), logits_dt),
                grid=(n_tiles,),
                in_specs=[pl.BlockSpec((tr, 1), lambda i: (i, 0)),
                          pl.BlockSpec((Vp, Vp), lambda i: (0, 0))],
                out_specs=pl.BlockSpec((tr, Vp), lambda i: (i, 0)),
                compiler_params=params(("parallel",)),
            )(idx2, table_res)
            return unpad(logits).reshape(B, T, V), None

        # CE path: leading 2-way "parallel" core-group axis (shards row tiles
        # across v7x's 2 TensorCores; near-free serial groups on v5e/v6e) with
        # per-group partial losses summed outside the kernel.
        n_tiles = _cdiv(N, tr)
        NC = 2 if n_tiles >= 2 else 1
        n_tiles = _round_up(n_tiles, NC)
        TPC = n_tiles // NC
        N_pad = n_tiles * tr

        idx2 = (idx_flat if N_pad == N else jnp.pad(idx_flat, (0, N_pad - N))).reshape(N_pad, 1)
        tgt_flat = targets.reshape(-1).astype(jnp.int32)
        tgt2 = (tgt_flat if N_pad == N else jnp.pad(tgt_flat, (0, N_pad - N))).reshape(N_pad, 1)

        row_map = lambda c, i: (c * TPC + i, 0)
        loss_map = lambda c, i: (c, 0)
        tbl_map = lambda c, i: (0, 0)

        if loss_only:
            loss_part = pl.pallas_call(
                functools.partial(_resident_ce_loss_only_kernel, tr=tr, n_valid=N,
                                  inv_n=inv_n, tiles_per_core=TPC),
                out_shape=jax.ShapeDtypeStruct((NC, 1), jnp.float32),
                grid=(NC, TPC),
                in_specs=[pl.BlockSpec((tr, 1), row_map),
                          pl.BlockSpec((tr, 1), row_map),
                          pl.BlockSpec((Vp, Vp), tbl_map)],
                out_specs=pl.BlockSpec((1, 1), loss_map),
                compiler_params=params(("parallel", "arbitrary")),
            )(idx2, tgt2, table_res)
            return None, jnp.sum(loss_part)

        logits, loss_part = pl.pallas_call(
            functools.partial(_resident_ce_kernel, tr=tr, n_valid=N,
                              inv_n=inv_n, tiles_per_core=TPC),
            out_shape=(jax.ShapeDtypeStruct((N_pad, Vp), logits_dt),
                       jax.ShapeDtypeStruct((NC, 1), jnp.float32)),
            grid=(NC, TPC),
            in_specs=[pl.BlockSpec((tr, 1), row_map),
                      pl.BlockSpec((tr, 1), row_map),
                      pl.BlockSpec((Vp, Vp), tbl_map)],
            out_specs=(pl.BlockSpec((tr, Vp), row_map),
                       pl.BlockSpec((1, 1), loss_map)),
            compiler_params=params(("parallel", "arbitrary")),
        )(idx2, tgt2, table_res)
        return unpad(logits), jnp.sum(loss_part)

    # -------------------------------------------------------------- fallback
    # Large table: keep it in HBM, DMA-gather rows (ids scalar-prefetched into
    # SMEM), double-buffered across grid tiles.  Grid must be "arbitrary" so the
    # ping-pong priming stays sequential (also required by the loss accumulator).
    table_g = table if Vp == V else jnp.pad(table, ((0, 0), (0, Vp - V)),
                                            constant_values=pad_val)
    n_tiles = _cdiv(N, tr)
    N_pad = n_tiles * tr
    idx_g = idx_flat if N_pad == N else jnp.pad(idx_flat, (0, N_pad - N))

    def gather_scratch():
        return [pltpu.VMEM((2, tr, Vp), table.dtype),
                pltpu.SemaphoreType.DMA((2, tr))]

    if targets is None:
        logits = pl.pallas_call(
            functools.partial(_gather_logits_kernel, tr=tr),
            out_shape=jax.ShapeDtypeStruct((N_pad, Vp), logits_dt),
            grid_spec=pltpu.PrefetchScalarGridSpec(
                num_scalar_prefetch=1,
                grid=(n_tiles,),
                in_specs=[pl.BlockSpec(memory_space=pl.ANY)],        # table in HBM
                out_specs=pl.BlockSpec((tr, Vp), lambda i, idx_ref: (i, 0)),
                scratch_shapes=gather_scratch()),
            compiler_params=params(("arbitrary",)),
        )(idx_g, table_g)
        return unpad(logits).reshape(B, T, V), None

    tgt_flat = targets.reshape(-1).astype(jnp.int32)
    tgt2 = (tgt_flat if N_pad == N else jnp.pad(tgt_flat, (0, N_pad - N))).reshape(N_pad, 1)

    if loss_only:
        loss = pl.pallas_call(
            functools.partial(_gather_ce_loss_only_kernel, tr=tr, n_valid=N, inv_n=inv_n),
            out_shape=jax.ShapeDtypeStruct((1, 1), jnp.float32),
            grid_spec=pltpu.PrefetchScalarGridSpec(
                num_scalar_prefetch=1,
                grid=(n_tiles,),
                in_specs=[pl.BlockSpec((tr, 1), lambda i, idx_ref: (i, 0)),
                          pl.BlockSpec(memory_space=pl.ANY)],
                out_specs=pl.BlockSpec((1, 1), lambda i, idx_ref: (0, 0)),
                scratch_shapes=gather_scratch()),
            compiler_params=params(("arbitrary",)),
        )(idx_g, tgt2, table_g)
        return None, loss[0, 0]

    logits, loss = pl.pallas_call(
        functools.partial(_gather_ce_kernel, tr=tr, n_valid=N, inv_n=inv_n),
        out_shape=(jax.ShapeDtypeStruct((N_pad, Vp), logits_dt),
                   jax.ShapeDtypeStruct((1, 1), jnp.float32)),
        grid_spec=pltpu.PrefetchScalarGridSpec(
            num_scalar_prefetch=1,
            grid=(n_tiles,),
            in_specs=[pl.BlockSpec((tr, 1), lambda i, idx_ref: (i, 0)),
                      pl.BlockSpec(memory_space=pl.ANY)],
            out_specs=(pl.BlockSpec((tr, Vp), lambda i, idx_ref: (i, 0)),
                       pl.BlockSpec((1, 1), lambda i, idx_ref: (0, 0))),
            scratch_shapes=gather_scratch()),
        compiler_params=params(("arbitrary",)),
    )(idx_g, tgt2, table_g)
    return unpad(logits), loss[0, 0]


# TODO(synk): BigramModel.generate (autoregressive torch.multinomial sampling
# loop) is host-side control flow and is not implemented as a kernel.

if __name__ == "__main__":
    VOCAB = 128     # lane-aligned vocab size
    B, T = 2, 8

    key = jax.random.PRNGKey(0)
    k_table, k_idx, k_tgt = jax.random.split(key, 3)

    # nn.Embedding default init: N(0, 1)
    table = jax.random.normal(k_table, (VOCAB, VOCAB), dtype=jnp.float32)
    idx = jax.random.randint(k_idx, (B, T), 0, VOCAB, dtype=jnp.int32)
    targets = jax.random.randint(k_tgt, (B, T), 0, VOCAB, dtype=jnp.int32)

    # Pure-JAX reference
    ref_logits = table[idx.reshape(-1)]
    ref_lse = jax.scipy.special.logsumexp(ref_logits, axis=-1)
    ref_tgt = ref_logits[jnp.arange(B * T), targets.reshape(-1)]
    ref_loss = jnp.mean(ref_lse - ref_tgt)

    # 1) Resident-table fast path (default): full forward
    logits, loss = bigram_forward(idx, table, targets)
    jax.block_until_ready((logits, loss))
    assert logits.shape == (B * T, VOCAB)
    assert jnp.allclose(logits, ref_logits, atol=1e-5)
    assert jnp.allclose(loss, ref_loss, atol=1e-5)

    # 2) Fast path, multi-tile -> exercises the 2-way core-group loss partials
    logits2, loss2 = bigram_forward(idx, table, targets, row_tile=8)
    jax.block_until_ready((logits2, loss2))
    assert jnp.allclose(logits2, ref_logits, atol=1e-5)
    assert jnp.allclose(loss2, ref_loss, atol=1e-5)

    # 3) Fast path, inference (targets=None)
    logits_nt, loss_nt = bigram_forward(idx, table, None, row_tile=8)
    jax.block_until_ready(logits_nt)
    assert loss_nt is None
    assert logits_nt.shape == (B, T, VOCAB)
    assert jnp.allclose(logits_nt.reshape(B * T, VOCAB), ref_logits, atol=1e-5)

    # 4) Fast path, loss only (no logits HBM writeback)
    _, loss_lo = bigram_forward(idx, table, targets, loss_only=True)
    jax.block_until_ready(loss_lo)
    assert jnp.allclose(loss_lo, ref_loss, atol=1e-5)

    # 5) Fast path with padded tail rows (N not a multiple of the tile)
    idx_r = idx[:, :5]
    tgt_r = targets[:, :5]
    refl_r = table[idx_r.reshape(-1)]
    refloss_r = jnp.mean(jax.scipy.special.logsumexp(refl_r, axis=-1)
                         - refl_r[jnp.arange(B * 5), tgt_r.reshape(-1)])
    logits_r, loss_r = bigram_forward(idx_r, table, tgt_r, row_tile=8)
    jax.block_until_ready((logits_r, loss_r))
    assert logits_r.shape == (B * 5, VOCAB)
    assert jnp.allclose(logits_r, refl_r, atol=1e-5)
    assert jnp.allclose(loss_r, refloss_r, atol=1e-5)

    # 6) HBM-gather fallback (forced), multi-tile -> exercises the DMA pipeline
    g_logits, g_loss = bigram_forward(idx, table, targets, row_tile=8, force_gather=True)
    jax.block_until_ready((g_logits, g_loss))
    assert jnp.allclose(g_logits, ref_logits, atol=1e-5)
    assert jnp.allclose(g_loss, ref_loss, atol=1e-5)

    g_logits_nt, _ = bigram_forward(idx, table, None, row_tile=8, force_gather=True)
    jax.block_until_ready(g_logits_nt)
    assert jnp.allclose(g_logits_nt.reshape(B * T, VOCAB), ref_logits, atol=1e-5)

    _, g_loss_lo = bigram_forward(idx, table, targets, row_tile=8,
                                  force_gather=True, loss_only=True)
    jax.block_until_ready(g_loss_lo)
    assert jnp.allclose(g_loss_lo, ref_loss, atol=1e-5)

    print("KERNEL_OK")
</pallas_src>

<mosaic_0001>
module attributes {stable_mosaic.version = 11 : i64} {
  func.func @_resident_ce_kernel(%arg0: i32, %arg1: i32, %arg2: memref<16x1xi32, #tpu.memory_space<vmem>>, %arg3: memref<16x1xi32, #tpu.memory_space<vmem>>, %arg4: memref<128x128xf32, #tpu.memory_space<vmem>>, %arg5: memref<16x128xf32, #tpu.memory_space<vmem>>, %arg6: memref<1x1xf32, #tpu.memory_space<vmem>>) attributes {dimension_semantics = [#tpu.dimension_semantics<parallel>, #tpu.dimension_semantics<arbitrary>], iteration_bounds = array<i64: 1, 1>, scalar_prefetch = 0 : i64, scratch_operands = 0 : i64, tpu.core_type = #tpu.core_type<tc>, window_params = [{transform_indices = @transform_0, window_bounds = array<i64: 16, 1>}, {transform_indices = @transform_1, window_bounds = array<i64: 16, 1>}, {pipeline_mode = #tpu.pipeline_mode<synchronous>, transform_indices = @transform_2, window_bounds = array<i64: 128, 128>}, {transform_indices = @transform_3, window_bounds = array<i64: 16, 128>}, {transform_indices = @transform_4, window_bounds = array<i64: 1, 1>}]} {
    %c0 = arith.constant 0 : index
    %c0_0 = arith.constant 0 : index
    %0 = vector.load %arg2[%c0, %c0_0] : memref<16x1xi32, #tpu.memory_space<vmem>>, vector<16x1xi32>
    %c0_1 = arith.constant 0 : index
    %c0_2 = arith.constant 0 : index
    %1 = vector.load %arg4[%c0_1, %c0_2] : memref<128x128xf32, #tpu.memory_space<vmem>>, vector<128x128xf32>
    %2 = tpu.iota {dimensions = array<i32: 1>} : vector<16x128xi32>
    %3 = vector.broadcast %0 : vector<16x1xi32> to vector<16x128xi32>
    %4 = arith.cmpi eq, %3, %2 : vector<16x128xi32>
    %5 = arith.extui %4 : vector<16x128xi1> to vector<16x128xi32>
    %6 = arith.sitofp %5 : vector<16x128xi32> to vector<16x128xf32>
    %cst = arith.constant dense<0.000000e+00> : vector<16x128xf32>
    %7 = tpu.matmul %6, %1, %cst {dimension_numbers = #tpu.dot_dimension_numbers<[1], [0], [0], [1], [0, 0, 1, 1], [], []>} : vector<16x128xf32>, vector<128x128xf32>, vector<16x128xf32> -> vector<16x128xf32>
    %c0_3 = arith.constant 0 : index
    %c0_4 = arith.constant 0 : index
    %8 = vector.load %arg5[%c0_3, %c0_4] : memref<16x128xf32, #tpu.memory_space<vmem>>, vector<16x128xf32>
    tpu.vector_store %arg5[%c0_3, %c0_4], %7 {strides = array<i32>} : memref<16x128xf32, #tpu.memory_space<vmem>>, vector<16x128xf32>,
    %c1_i32 = arith.constant 1 : i32
    %9 = arith.muli %arg0, %c1_i32 : i32
    %10 = arith.addi %9, %arg1 : i32
    %c16_i32 = arith.constant 16 : i32
    %11 = arith.muli %10, %c16_i32 : i32
    %c0_5 = arith.constant 0 : index
    %c0_6 = arith.constant 0 : index
    %12 = vector.load %arg3[%c0_5, %c0_6] : memref<16x1xi32, #tpu.memory_space<vmem>>, vector<16x1xi32>
    %c0_i32 = arith.constant 0 : i32
    %13 = arith.cmpi eq, %arg1, %c0_i32 : i32
    %14 = arith.extui %13 : i1 to i32
    %c0_i32_7 = arith.constant 0 : i32
    %15 = arith.cmpi ne, %14, %c0_i32_7 : i32
    scf.if %15 {
      %cst_21 = arith.constant 0.000000e+00 : f32
      %48 = vector.broadcast %cst_21 : f32 to vector<1x1xf32>
      %c0_22 = arith.constant 0 : index
      %c0_23 = arith.constant 0 : index
      %49 = vector.load %arg6[%c0_22, %c0_23] : memref<1x1xf32, #tpu.memory_space<vmem>>, vector<1x1xf32>
      tpu.vector_store %arg6[%c0_22, %c0_23], %48 {strides = array<i32>} : memref<1x1xf32, #tpu.memory_space<vmem>>, vector<1x1xf32>,
    } else {
    }
    %16 = tpu.iota {dimensions = array<i32: 1>} : vector<16x128xi32>
    %cst_8 = arith.constant dense<0xFF800000> : vector<16xf32>
    %17 = vector.multi_reduction <maximumf>, %7, %cst_8 [1] : vector<16x128xf32> to vector<16xf32>
    %18 = vector.shape_cast %17 : vector<16xf32> to vector<16x1xf32>
    %19 = vector.broadcast %18 : vector<16x1xf32> to vector<16x128xf32>
    %20 = arith.subf %7, %19 : vector<16x128xf32>
    %21 = math.exp %20 : vector<16x128xf32>
    %cst_9 = arith.constant dense<0.000000e+00> : vector<16xf32>
    %22 = vector.multi_reduction <add>, %21, %cst_9 [1] : vector<16x128xf32> to vector<16xf32>
    %23 = vector.shape_cast %22 : vector<16xf32> to vector<16x1xf32>
    %24 = math.log %23 : vector<16x1xf32>
    %25 = arith.addf %18, %24 : vector<16x1xf32>
    %26 = vector.broadcast %12 : vector<16x1xi32> to vector<16x128xi32>
    %27 = arith.cmpi eq, %26, %16 : vector<16x128xi32>
    %cst_10 = arith.constant 0.000000e+00 : f32
    %28 = vector.broadcast %cst_10 : f32 to vector<16x128xf32>
    %29 = arith.select %27, %7, %28 : vector<16x128xi1>, vector<16x128xf32>
    %cst_11 = arith.constant dense<0.000000e+00> : vector<16xf32>
    %30 = vector.multi_reduction <add>, %29, %cst_11 [1] : vector<16x128xf32> to vector<16xf32>
    %31 = vector.shape_cast %30 : vector<16xf32> to vector<16x1xf32>
    %32 = tpu.iota {dimensions = array<i32: 0>} : vector<16x1xi32>
    %33 = vector.broadcast %11 : i32 to vector<16x1xi32>
    %34 = arith.addi %33, %32 : vector<16x1xi32>
    %c16_i32_12 = arith.constant 16 : i32
    %35 = vector.broadcast %c16_i32_12 : i32 to vector<16x1xi32>
    %36 = arith.cmpi slt, %34, %35 : vector<16x1xi32>
    %37 = arith.subf %25, %31 : vector<16x1xf32>
    %cst_13 = arith.constant 0.000000e+00 : f32
    %38 = vector.broadcast %cst_13 : f32 to vector<16x1xf32>
    %39 = arith.select %36, %37, %38 : vector<16x1xi1>, vector<16x1xf32>
    %c0_14 = arith.constant 0 : index
    %c0_15 = arith.constant 0 : index
    %40 = vector.load %arg6[%c0_14, %c0_15] : memref<1x1xf32, #tpu.memory_space<vmem>>, vector<1x1xf32>
    %cst_16 = arith.constant dense<0.000000e+00> : vector<1xf32>
    %41 = vector.multi_reduction <add>, %39, %cst_16 [0] : vector<16x1xf32> to vector<1xf32>
    %42 = vector.shape_cast %41 : vector<1xf32> to vector<1x1xf32>
    %43 = arith.addf %40, %42 : vector<1x1xf32>
    %c0_17 = arith.constant 0 : index
    %c0_18 = arith.constant 0 : index
    %44 = vector.load %arg6[%c0_17, %c0_18] : memref<1x1xf32, #tpu.memory_space<vmem>>, vector<1x1xf32>
    tpu.vector_store %arg6[%c0_17, %c0_18], %43 {strides = array<i32>} : memref<1x1xf32, #tpu.memory_space<vmem>>, vector<1x1xf32>,
    %c0_i32_19 = arith.constant 0 : i32
    %45 = arith.cmpi eq, %arg1, %c0_i32_19 : i32
    %46 = arith.extui %45 : i1 to i32
    %c0_i32_20 = arith.constant 0 : i32
    %47 = arith.cmpi ne, %46, %c0_i32_20 : i32
    scf.if %47 {
      %c0_21 = arith.constant 0 : index
      %c0_22 = arith.constant 0 : index
      %48 = vector.load %arg6[%c0_21, %c0_22] : memref<1x1xf32, #tpu.memory_space<vmem>>, vector<1x1xf32>
      %cst_23 = arith.constant 6.250000e-02 : f32
      %49 = vector.broadcast %cst_23 : f32 to vector<1x1xf32>
      %50 = arith.mulf %48, %49 : vector<1x1xf32>
      %c0_24 = arith.constant 0 : index
      %c0_25 = arith.constant 0 : index
      %51 = vector.load %arg6[%c0_24, %c0_25] : memref<1x1xf32, #tpu.memory_space<vmem>>, vector<1x1xf32>
      tpu.vector_store %arg6[%c0_24, %c0_25], %50 {strides = array<i32>} : memref<1x1xf32, #tpu.memory_space<vmem>>, vector<1x1xf32>,
    } else {
    }
    return
  }
  func.func @transform_0(%arg0: i32, %arg1: i32) -> (i32, i32) {
    %c1_i32 = arith.constant 1 : i32
    %0 = arith.muli %arg0, %c1_i32 : i32
    %1 = arith.addi %0, %arg1 : i32
    %c0_i32 = arith.constant 0 : i32
    %c0_i32_0 = arith.constant 0 : i32
    return %1, %c0_i32 : i32, i32
  }
  func.func @transform_1(%arg0: i32, %arg1: i32) -> (i32, i32) {
    %c1_i32 = arith.constant 1 : i32
    %0 = arith.muli %arg0, %c1_i32 : i32
    %1 = arith.addi %0, %arg1 : i32
    %c0_i32 = arith.constant 0 : i32
    %c0_i32_0 = arith.constant 0 : i32
    return %1, %c0_i32 : i32, i32
  }
  func.func @transform_2(%arg0: i32, %arg1: i32) -> (i32, i32) {
    %c0_i32 = arith.constant 0 : i32
    %c0_i32_0 = arith.constant 0 : i32
    %c0_i32_1 = arith.constant 0 : i32
    return %c0_i32, %c0_i32_0 : i32, i32
  }
  func.func @transform_3(%arg0: i32, %arg1: i32) -> (i32, i32) {
    %c1_i32 = arith.constant 1 : i32
    %0 = arith.muli %arg0, %c1_i32 : i32
    %1 = arith.addi %0, %arg1 : i32
    %c0_i32 = arith.constant 0 : i32
    %c0_i32_0 = arith.constant 0 : i32
    return %1, %c0_i32 : i32, i32
  }
  func.func @transform_4(%arg0: i32, %arg1: i32) -> (i32, i32) {
    %c0_i32 = arith.constant 0 : i32
    %c0_i32_0 = arith.constant 0 : i32
    return %arg0, %c0_i32 : i32, i32
  }
}

</mosaic_0001>

<llo_original>
// kernel: tpu_custom_call.1
$region0: #{tpu_custom_call.1}
  #allocation0 [shape = 'u32[]', space=smem, size = 0x4, offset = 0x4, fixed_abs, tag = 'smem constant byte address 0x4 - core index']
  #allocation1 [shape = 'u32[72,128]{1,0:T(1,128)}', space=vmem, size = 0x9000, scoped, tag = 'internal scratch']
  %s0 = inlined_call_operand.vmem [shape: s32[16,1], index: 0, kind: input, shape index: {}]
  %s1 = inlined_call_operand.vmem [shape: s32[16,1], index: 1, kind: input, shape index: {}]
  %s2 = inlined_call_operand.hbm [shape: f32[128,128], index: 2, kind: input, shape index: {}]
  %s3 = inlined_call_operand.hbm [shape: f32[16,128], index: 3, kind: output, shape index: {0}]
  %s4 = inlined_call_operand.hbm [shape: f32[1,1], index: 4, kind: output, shape index: {1}]
  %5 = xla_tuple %s3, %s4
  %s6 = sld [smem:[#allocation0]]
  $region42: #{tpu_custom_call.1} parent=0
    _
  %s8 = ssub.s32 1, %s6
  %s9 = scalar_select 0, %s8, %s6
  $region1: #{tpu_custom_call.1} parent=0
    #allocation2 [shape = 'u8[65536]{0}', space=vmem, size = 0x10000, scoped, tag = 'input window, operand 2, single buffered']
    #allocation3 [shape = 's32[1]{0}', space=sflag, size = 0x4, scoped, tag = 'scoped memory for tpu_custom_call.1']
    #allocation4 [shape = 's32[1]{0}', space=sflag, size = 0x4, scoped, tag = 'scoped memory for tpu_custom_call.1']
    #allocation5 [shape = 'u8[8192]{0}', space=vmem, size = 0x2000, scoped, tag = 'output window, operand 0, single buffered']
    #allocation6 [shape = 'u8[512]{0}', space=vmem, size = 0x400, scoped, tag = 'output window, operand 1, single buffered']
    #allocation7 [shape = 's32[1]{0}', space=sflag, size = 0x4, scoped, tag = 'scoped memory for tpu_custom_call.1']
    %10 = vsyncpa [#allocation3], 0
    %11 = vsyncpa [#allocation4], 0
    %12 = vsyncpa [#allocation7], 0
    // Predicated region
    $region2: #{tpu_custom_call.1} parent=1 // pred_check
      _
    $region3: #{tpu_custom_call.1} parent=1 // pred_check_branch
      %14 = sbr.rel (0) target = $region5
    $region4: #{tpu_custom_call.1} parent=1 // pred_region
      %s15 = sadd.s32 0, 0
      %s16 = smul.u32 2, %s15
      %p17 = scmp.lt.s32.totalorder %s16, 1
      %s18 = scalar_select %p17, %s16, 1
      %s19 = smul.addr %s18, 8
      %s20 = scalar_lea.vmem %s0, %s19
      %s21 = sadd.s32 0, 0
      %s22 = smul.u32 2, %s21
    $region5: #{tpu_custom_call.1} parent=1 // pred_fallthru
      _
    // Predicated region
    $region6: #{tpu_custom_call.1} parent=1 // pred_check
      _
    $region7: #{tpu_custom_call.1} parent=1 // pred_check_branch
      %24 = sbr.rel (0) target = $region9
    $region8: #{tpu_custom_call.1} parent=1 // pred_region
      %s25 = sadd.s32 0, 0
      %s26 = smul.u32 2, %s25
      %p27 = scmp.lt.s32.totalorder %s26, 1
      %s28 = scalar_select %p27, %s26, 1
      %s29 = smul.addr %s28, 8
      %s30 = scalar_lea.vmem %s1, %s29
      %s31 = sadd.s32 0, 0
      %s32 = smul.u32 2, %s31
    $region9: #{tpu_custom_call.1} parent=1 // pred_fallthru
      _
    // Predicated region
    $region10: #{tpu_custom_call.1} parent=1 // pred_check
      _
    $region11: #{tpu_custom_call.1} parent=1 // pred_check_branch
      %34 = sbr.rel (0) target = $region13
    $region12: #{tpu_custom_call.1} parent=1 // pred_region
      %36 = vsyncadd [#allocation3], 0
      %s37 = sshll.u32 %s2, 4
      %s38 = int_to_ptr.hbm [resolvable:$true] %s37
      %s39 = sshll.u32 [#allocation2], 4
      %s40 = int_to_ptr.vmem [resolvable:$true] %s39
      %45 = dma.hbm_to_vmem [thread:$0]  %s38, 2048, %s40, [#allocation3], 128, 128, 8
    $region13: #{tpu_custom_call.1} parent=1 // pred_fallthru
      _
    // Predicated region
    $region14: #{tpu_custom_call.1} parent=1 // pred_check
      _
    $region15: #{tpu_custom_call.1} parent=1 // pred_check_branch
      %47 = sbr.rel (0) target = $region17
    $region16: #{tpu_custom_call.1} parent=1 // pred_region
      %49 = dma.done [#allocation3], 2048
    $region17: #{tpu_custom_call.1} parent=1 // pred_fallthru
      _
    %s50 = sadd.s32 0, 0
    %s51 = smul.u32 2, %s50
    %p52 = scmp.lt.s32.totalorder %s51, 1
    %s53 = scalar_select %p52, %s51, 1
    %s54 = smul.addr %s53, 8
    %s55 = scalar_lea.vmem %s0, %s54
    %s56 = sadd.s32 0, 0
    %s57 = smul.u32 2, %s56
    %p58 = scmp.lt.s32.totalorder %s57, 1
    %s59 = scalar_select %p58, %s57, 1
    %s60 = smul.addr %s59, 8
    %s61 = scalar_lea.vmem %s1, %s60
    %s62 = sadd.s32 0, 0
    %s63 = smul.u32 2, %s62
    %p64 = scmp.lt.s32.totalorder %s63, 1
    %s65 = scalar_select %p64, %s63, 1
    %s66 = smul.addr %s65, 8
    %s67 = scalar_lea.vmem %s0, %s66
    %s68 = sadd.s32 0, 0
    %s69 = smul.u32 2, %s68
    %s70 = sadd.s32 0, 0
    %s71 = smul.u32 2, %s70
    %p72 = scmp.lt.s32.totalorder %s71, 1
    %s73 = scalar_select %p72, %s71, 1
    %s74 = smul.addr %s73, 8
    %s75 = scalar_lea.vmem %s1, %s74
    %s76 = sadd.s32 0, 0
    %s77 = smul.u32 2, %s76
    %s78 = sadd.s32 0, 0
    %s79 = smul.u32 2, %s78
    %v80 = vld [vmem:[%s67] sm:$0xff]
    %v81 = vld [vmem:[%s67 + $0x8] sm:$0xff]
    %v82 = vld [vmem:[#allocation2] sm:$0xff]
    %v83 = vld [vmem:[#allocation2 + $0x8] sm:$0xff]
    %v84 = vld [vmem:[#allocation2 + $0x10] sm:$0xff]
    %v85 = vld [vmem:[#allocation2 + $0x18] sm:$0xff]
    %v86 = vld [vmem:[#allocation2 + $0x20] sm:$0xff]
    %v87 = vld [vmem:[#allocation2 + $0x28] sm:$0xff]
    %v88 = vld [vmem:[#allocation2 + $0x30] sm:$0xff]
    %v89 = vld [vmem:[#allocation2 + $0x38] sm:$0xff]
    %v90 = vld [vmem:[#allocation2 + $0x40] sm:$0xff]
    %v91 = vld [vmem:[#allocation2 + $0x48] sm:$0xff]
    %v92 = vld [vmem:[#allocation2 + $0x50] sm:$0xff]
    %v93 = vld [vmem:[#allocation2 + $0x58] sm:$0xff]
    %v94 = vld [vmem:[#allocation2 + $0x60] sm:$0xff]
    %v95 = vld [vmem:[#allocation2 + $0x68] sm:$0xff]
    %v96 = vld [vmem:[#allocation2 + $0x70] sm:$0xff]
    %v97 = vld [vmem:[#allocation2 + $0x78] sm:$0xff]
    %v98 = vlaneseq
    %v99 = vand.u32 %v98, 127
    %100 = vset.pattern.permute.xlu0 0
    %101 = vperm.xlu0 %100, %v80
    %v102 = vpop.permute.xlu0 %101
    %103 = vset.pattern.permute.xlu0 0
    %104 = vperm.xlu0 %103, %v81
    %v105 = vpop.permute.xlu0 %104
    %vm106 = vcmp.eq.s32.totalorder %v102, %v99
    %vm107 = vcmp.eq.s32.totalorder %v105, %v99
    %v108 = vsel %vm106, 1, 0
    %v109 = vsel %vm107, 1, 0
    %v110 = vcvt.s32.f32 %v108
    %v111 = vcvt.s32.f32 %v109
    %112 = vmatpush.msra.mxu0 %v97
    %113 = vmatpush.msra.mxu0 %v96
    %114 = vmatpush.msra.mxu0 %v95
    %115 = vmatpush.msra.mxu0 %v94
    %116 = vmatpush.msra.mxu0 %v93
    %117 = vmatpush.msra.mxu0 %v92
    %118 = vmatpush.msra.mxu0 %v91
    %119 = vmatpush.msra.mxu0 %v90
    %120 = vmatpush.msra.mxu0 %v89
    %121 = vmatpush.msra.mxu0 %v88
    %122 = vmatpush.msra.mxu0 %v87
    %123 = vmatpush.msra.mxu0 %v86
    %124 = vmatpush.msra.mxu0 %v85
    %125 = vmatpush.msra.mxu0 %v84
    %126 = vmatpush.msra.mxu0 %v83
    %127 = vmatpush.msra.mxu0 %v82
    %128 = vmatmul.f32.gmra.mxu0 %v110
    %v129 = vpop.f32.mrf.mxu0
    %v130 = vadd.f32 0.0, %v129
    %131 = vmatmul.f32.gmra.mxu0 %v111
    %v132 = vpop.f32.mrf.mxu0
    %v133 = vadd.f32 0.0, %v132
    %134 = vdwg.mxu0
    %135 = vst [vmem:[#allocation5] sm:$0xff] %v130
    %136 = vst [vmem:[#allocation5 + $0x8] sm:$0xff] %v133
    %s137 = sadd.s32 0, 0
    %s138 = smul.u32 %s137, 16
    %v139 = vld [vmem:[%s75] sm:$0xff]
    %v140 = vld [vmem:[%s75 + $0x8] sm:$0xff]
    %p141 = scmp.eq.s32.totalorder 0, 0
    // Predicated region
    $region18: #{tpu_custom_call.1} parent=1 // pred_check
      %p142 = pneg %p141
    $region19: #{tpu_custom_call.1} parent=1 // pred_check_branch
      %144 = sbr.rel (%p142) target = $region21
    $region20: #{tpu_custom_call.1} parent=1 // pred_region
      %vm145 = vcmask 0
      %146 = vst.msk [vmem:[#allocation6] sm:$0x1] %vm145, 0.0
    $region21: #{tpu_custom_call.1} parent=1 // pred_fallthru
      _
    %147 = vmax.xlane.f32.xlu0 %v130
    %v148 = vpop.xlane.xlu0 %147
    %149 = vmax.xlane.f32.xlu0 %v133
    %v150 = vpop.xlane.xlu0 %149
    %v151 = vsub.f32 %v130, %v148
    %v152 = vsub.f32 %v133, %v150
    %v153 = vmul.f32 %v151, 1.442695
    %v154 = vpow.pop %v153
    %v155 = vmul.f32 %v152, 1.442695
    %v156 = vpow.pop %v155
    %157 = vadd.xlane.f32.xlu0 %v154
    %v158 = vpop.xlane.xlu0 %157
    %159 = vadd.xlane.f32.xlu0 %v156
    %v160 = vpop.xlane.xlu0 %159
    %v161 = vlog2.pop %v158
    %v162 = vmul.f32 %v161, 0.6931472
    %v163 = vlog2.pop %v160
    %v164 = vmul.f32 %v163, 0.6931472
    %v165 = vadd.f32 %v148, %v162
    %v166 = vadd.f32 %v150, %v164
    %167 = vset.pattern.permute.xlu0 0
    %168 = vperm.xlu0 %167, %v139
    %v169 = vpop.permute.xlu0 %168
    %170 = vset.pattern.permute.xlu0 0
    %171 = vperm.xlu0 %170, %v140
    %v172 = vpop.permute.xlu0 %171
    %vm173 = vcmp.eq.s32.totalorder %v169, %v99
    %vm174 = vcmp.eq.s32.totalorder %v172, %v99
    %v175 = vsel %vm173, %v130, 0.0
    %v176 = vsel %vm174, %v133, 0.0
    %177 = vadd.xlane.f32.xlu0 %v175
    %v178 = vpop.xlane.xlu0 %177
    %179 = vadd.xlane.f32.xlu0 %v176
    %v180 = vpop.xlane.xlu0 %179
    %v181 = vlaneseq
    %v182 = vshrl.u32 %v181, 7
    %v183 = vadd.s32 %v182, 8
    %v184 = vstv %s138
    %v185 = vadd.s32 %v184, %v182
    %v186 = vadd.s32 %v184, %v183
    %vm187 = vcmp.lt.s32.totalorder %v185, 16
    %vm188 = vcmp.lt.s32.totalorder %v186, 16
    %v189 = vsub.f32 %v165, %v178
    %v190 = vsub.f32 %v166, %v180
    %v191 = vsel %vm187, %v189, 0.0
    %v192 = vsel %vm188, %v190, 0.0
    %v193 = vld [vmem:[#allocation6] sm:$0x1]
    %v194 = vadd.f32 %v191, %v192
    %v195 = vrot.slane %v194, 4
    %v196 = vadd.f32 %v194, %v195
    %v197 = vrot.slane %v196, 2
    %v198 = vadd.f32 %v196, %v197
    %v199 = vrot.slane %v198, 1
    %v200 = vadd.f32 %v198, %v199
    %v201 = vadd.f32 %v193, %v200
    %vm202 = vcmask 0
    %203 = vst.msk [vmem:[#allocation6] sm:$0x1] %vm202, %v201
    // Predicated region
    $region22: #{tpu_custom_call.1} parent=1 // pred_check
      %p204 = pneg %p141
    $region23: #{tpu_custom_call.1} parent=1 // pred_check_branch
      %206 = sbr.rel (%p204) target = $region25
    $region24: #{tpu_custom_call.1} parent=1 // pred_region
      %v207 = vld [vmem:[#allocation6] sm:$0x1]
      %v208 = vmul.f32 %v207, 0.0625
      %209 = vst.msk [vmem:[#allocation6] sm:$0x1] %vm202, %v208
    $region25: #{tpu_custom_call.1} parent=1 // pred_fallthru
      _
    // Predicated region
    $region26: #{tpu_custom_call.1} parent=1 // pred_check
      _
    $region27: #{tpu_custom_call.1} parent=1 // pred_check_branch
      %211 = sbr.rel (0) target = $region29
    $region28: #{tpu_custom_call.1} parent=1 // pred_region
      %s212 = sadd.s32 0, 0
      %s213 = smul.u32 2, %s212
      %215 = vsyncadd [#allocation4], 0
      %s216 = smul.addr %s213, 8
      %s217 = scalar_lea.hbm %s3, %s216
      %s218 = sshll.u32 [#allocation5], 4
      %s219 = int_to_ptr.vmem [resolvable:$true] %s218
      %s220 = sshll.u32 %s217, 4
      %s221 = int_to_ptr.hbm [resolvable:$true] %s220
      %226 = dma.vmem_to_hbm [thread:$0]  %s219, 256, %s221, [#allocation4], 128, 128, 8
    $region29: #{tpu_custom_call.1} parent=1 // pred_fallthru
      _
    // Predicated region
    $region30: #{tpu_custom_call.1} parent=1 // pred_check
      _
    $region31: #{tpu_custom_call.1} parent=1 // pred_check_branch
      %228 = sbr.rel (0) target = $region33
    $region32: #{tpu_custom_call.1} parent=1 // pred_region
      %230 = vsyncadd [#allocation7], 0
      %s232 = sshll.u32 [#allocation6], 4
      %s233 = int_to_ptr.vmem [resolvable:$true] %s232
      %s234 = sshll.u32 %s4, 4
      %s235 = int_to_ptr.hbm [resolvable:$true] %s234
      %237 = dma.vmem_to_hbm [thread:$0]  %s233, 16, %s235, [#allocation7]
    $region33: #{tpu_custom_call.1} parent=1 // pred_fallthru
      _
    // Predicated region
    $region34: #{tpu_custom_call.1} parent=1 // pred_check
      _
    $region35: #{tpu_custom_call.1} parent=1 // pred_check_branch
      %239 = sbr.rel (0) target = $region37
    $region36: #{tpu_custom_call.1} parent=1 // pred_region
      %241 = dma.done [#allocation4], 256
    $region37: #{tpu_custom_call.1} parent=1 // pred_fallthru
      _
    // Predicated region
    $region38: #{tpu_custom_call.1} parent=1 // pred_check
      _
    $region39: #{tpu_custom_call.1} parent=1 // pred_check_branch
      %243 = sbr.rel (0) target = $region41
    $region40: #{tpu_custom_call.1} parent=1 // pred_region
      %245 = dma.done [#allocation7], 16
    $region41: #{tpu_custom_call.1} parent=1 // pred_fallthru
      _
    %246 = vsyncpa [#allocation3], 1
    %247 = vsyncpa [#allocation4], 1
    %248 = vsyncpa [#allocation7], 1

</llo_original>
